<compile_context>
chip_gen: v6e
topology: v6e:2x2x1
jax: 0.10.0
libtpu: 0.0.40
codegen_flags: <defaults>
</compile_context>

<pallas_src>
import jax
import jax.numpy as jnp
from jax import lax
from jax.experimental import pallas as pl
from jax.experimental.pallas import tpu as pltpu


def _round_up(a, m):
    return ((a + m - 1) // m) * m


def _mlp_kernel(x_ref,
                w1_ref, b1_ref,
                w2_ref, b2_ref,
                w3_ref, b3_ref,
                w4t_ref, b4_ref,
                o_ref):
    """Whole 4-layer MLP forward for one batch tile.

    x_ref:   [bt, F]           (native batch-major input tile, no wrapper prep)
    w*_ref:  torch layout [out, in];  b*_ref: [out, 1]
    w4t_ref: [L1/4, 1] (last layer, pre-transposed);  b4_ref: [1, 1]
    o_ref:   [1, bt]           (lane-dense output slab)
    """
    cdt = w1_ref.dtype  # compute dtype for MXU operands (f32 or bf16)

    x = x_ref[...]
    if x.dtype != cdt:
        x = x.astype(cdt)           # cast only inside the kernel (VMEM tile)

    # Layer 1: contract minor dims of W1 [L1, F] and x [bt, F] -> [L1, bt]
    # (feature-major from here on; bias/ReLU/store are lane-dense in batch).
    h = lax.dot_general(w1_ref[...], x,
                        dimension_numbers=(((1,), (1,)), ((), ())),
                        preferred_element_type=jnp.float32) + b1_ref[...]
    h = jnp.maximum(h, 0.0).astype(cdt)                        # [L1, bt]

    h = jnp.dot(w2_ref[...], h,
                preferred_element_type=jnp.float32) + b2_ref[...]
    h = jnp.maximum(h, 0.0).astype(cdt)                        # [L1/2, bt]

    h = jnp.dot(w3_ref[...], h,
                preferred_element_type=jnp.float32) + b3_ref[...]
    h = jnp.maximum(h, 0.0)                                    # [L1/4, bt] f32

    # Final (L1/4 -> 1) layer: VPU multiply + cross-sublane reduce (no MXU
    # pass, output stays a lane-dense [1, bt] slab).
    y = jnp.sum(w4t_ref[...].astype(jnp.float32) * h,
                axis=0, keepdims=True) + b4_ref[...]           # [1, bt]
    o_ref[...] = jnp.maximum(y, 0.0).astype(o_ref.dtype)


def _choose_batch_tile(B, batch_tile, num_tensorcores):
    """Pick the batch tile (rows per grid step)."""
    cap = 16384                      # keeps VMEM well inside every generation
    bt = min(_round_up(max(batch_tile, 128), 128), cap)
    if num_tensorcores > 1 and B > 128:
        # v7x: prefer an even number of grid steps across the TensorCores.
        steps = -(-B // bt)
        if steps <= 8 and steps % num_tensorcores:
            target = _round_up(max(steps, num_tensorcores), num_tensorcores)
            bt = min(bt, _round_up(-(-B // target), 128))
            bt = max(bt, 128)
    if B <= bt:
        return B                     # single exact block, no OOB rows at all
    return bt


def _vmem_bytes_estimate(bt, F, L1, x_itemsize, cdt_itemsize):
    """Rough per-step VMEM footprint (for vmem_limit_bytes)."""
    lanes = _round_up(bt, 128)
    x_buf = bt * _round_up(F, 128) * x_itemsize * 2            # double-buffered x
    x_cast = bt * _round_up(F, 128) * cdt_itemsize             # in-kernel cast copy
    x_rel = _round_up(F, 8) * lanes * cdt_itemsize             # possible relayout
    h1 = _round_up(L1, 8) * lanes * 4
    h2 = _round_up(max(L1 // 2, 1), 8) * lanes * 4
    h3 = _round_up(max(L1 // 4, 1), 8) * lanes * 4
    out = 8 * lanes * 4 * 2                                    # double-buffered out
    w = 16 * (L1 * F + L1 * (L1 // 2) + (L1 // 2) * (L1 // 4) + 2 * L1 + 8)
    return x_buf + x_cast + x_rel + h1 + h2 + h3 + out + w


def gp_nn_heuristic_forward(x, params, *, batch_tile=16384, compute_dtype=None,
                            num_tensorcores=1):
    """x: [B, num_GP_features]. Returns [B, 1] float32 (same as torch).

    num_tensorcores: set to 2 on v7x to shard the batch grid evenly across the
    two TensorCores; leave at 1 on v5e/v6e (serial grid).
    """
    B, F = x.shape
    w1, b1 = params["w1"], params["b1"]
    w2, b2 = params["w2"], params["b2"]
    w3, b3 = params["w3"], params["b3"]
    w4t, b4 = params["w4t"], params["b4"]
    L1 = w1.shape[0]

    if compute_dtype is None:
        # Only use bf16 when the bf16 bytes are what actually cross HBM.
        compute_dtype = jnp.bfloat16 if x.dtype == jnp.bfloat16 else jnp.float32

    bt = _choose_batch_tile(B, batch_tile, num_tensorcores)
    grid = (pl.cdiv(B, bt),)

    # Weights are tiny; casting them in the wrapper is negligible. x is passed
    # through untouched (no pad / transpose / cast pass over HBM).
    w1c = w1.astype(compute_dtype)
    w2c = w2.astype(compute_dtype)
    w3c = w3.astype(compute_dtype)
    w4tc = w4t.astype(compute_dtype)

    def resident(a):
        # Tiny parameter: full block, same block index every step -> stays
        # resident in VMEM across the whole grid.
        return pl.BlockSpec(a.shape, lambda i: (0, 0))

    est = _vmem_bytes_estimate(bt, F, L1, x.dtype.itemsize,
                               jnp.dtype(compute_dtype).itemsize)
    vmem_limit = int(min(max(est * 3 // 2 + (2 << 20), 32 << 20), 48 << 20))

    flops = 2 * B * (F * L1 + L1 * (L1 // 2)
                     + (L1 // 2) * (L1 // 4) + (L1 // 4))
    bytes_accessed = (B * F * x.dtype.itemsize + B * 4
                      + 4 * (L1 * F + L1 * (L1 // 2)
                             + (L1 // 2) * (L1 // 4) + 2 * L1 + 2))
    cost = pl.CostEstimate(flops=flops, transcendentals=0,
                           bytes_accessed=bytes_accessed)

    out = pl.pallas_call(
        _mlp_kernel,
        out_shape=jax.ShapeDtypeStruct((1, B), jnp.float32),
        grid=grid,
        in_specs=[
            pl.BlockSpec((bt, F), lambda i: (i, 0)),   # native [B, F] x tile
            resident(w1c), resident(b1),
            resident(w2c), resident(b2),
            resident(w3c), resident(b3),
            resident(w4tc), resident(b4),
        ],
        out_specs=pl.BlockSpec((1, bt), lambda i: (0, i)),   # lane-dense output
        compiler_params=pltpu.CompilerParams(
            dimension_semantics=("parallel",),
            vmem_limit_bytes=vmem_limit),
        cost_estimate=cost,
    )(x, w1c, b1, w2c, b2, w3c, b3, w4tc, b4)

    return out.reshape(B, 1)


def init_params(key, num_GP_features, L1_dim_size):
    """Synthetic init mirroring torch.nn.Linear shapes.

    Weights are stored in torch's [out, in] layout; biases as [out, 1].
    The last layer's weight is additionally stored pre-transposed as
    w4t: [L1/4, 1] so the kernel can do the VPU reduce directly.
    """
    dims = [num_GP_features, L1_dim_size, L1_dim_size // 2, L1_dim_size // 4, 1]
    params = {}
    keys = jax.random.split(key, 8)
    for layer in range(4):
        fan_in, fan_out = dims[layer], dims[layer + 1]
        bound = 1.0 / (fan_in ** 0.5)
        w = jax.random.uniform(keys[2 * layer], (fan_out, fan_in),
                               minval=-bound, maxval=bound, dtype=jnp.float32)
        b = jax.random.uniform(keys[2 * layer + 1], (fan_out, 1),
                               minval=-bound, maxval=bound, dtype=jnp.float32)
        if layer == 3:
            params["w4t"] = w.T            # [L1/4, 1]
            params["b4"] = b               # [1, 1]
        else:
            params[f"w{layer + 1}"] = w
            params[f"b{layer + 1}"] = b
    return params


def reference_forward(x, params):
    """Plain-JAX reference matching the PyTorch forward pass semantics."""
    h = jnp.maximum(x @ params["w1"].T + params["b1"][:, 0], 0.0)
    h = jnp.maximum(h @ params["w2"].T + params["b2"][:, 0], 0.0)
    h = jnp.maximum(h @ params["w3"].T + params["b3"][:, 0], 0.0)
    y = jnp.maximum(h @ params["w4t"] + params["b4"][0, 0], 0.0)
    return y


if __name__ == "__main__":
    num_GP_features = 16
    L1_dim_size = 32

    key = jax.random.PRNGKey(0)
    k_params, k_x1, k_x2 = jax.random.split(key, 3)
    params = init_params(k_params, num_GP_features, L1_dim_size)

    # Small batch: single exact block (block dims == array dims).
    x_small = jax.random.normal(k_x1, (8, num_GP_features), dtype=jnp.float32)
    y_small = jax.block_until_ready(gp_nn_heuristic_forward(x_small, params))
    y_small_ref = reference_forward(x_small, params)
    assert y_small.shape == (8, 1)
    assert jnp.allclose(y_small, y_small_ref, atol=1e-4, rtol=1e-4), \
        "small-batch mismatch vs reference"

    # Non-multiple batch, default tile: single exact block of 300 rows.
    x_big = jax.random.normal(k_x2, (300, num_GP_features), dtype=jnp.float32)
    y_big = jax.block_until_ready(gp_nn_heuristic_forward(x_big, params))
    y_big_ref = reference_forward(x_big, params)
    assert y_big.shape == (300, 1)
    assert jnp.allclose(y_big, y_big_ref, atol=1e-4, rtol=1e-4), \
        "large-batch (single block) mismatch vs reference"

    # Small forced tile: multi-step "parallel" grid with a ragged last block.
    y_big_t = jax.block_until_ready(
        gp_nn_heuristic_forward(x_big, params, batch_tile=128))
    assert jnp.allclose(y_big_t, y_big_ref, atol=1e-4, rtol=1e-4), \
        "large-batch (ragged grid) mismatch vs reference"

    # v7x-style call: even step count across 2 TensorCores (tile choice only).
    y_big_mc = jax.block_until_ready(
        gp_nn_heuristic_forward(x_big, params, num_tensorcores=2))
    assert jnp.allclose(y_big_mc, y_big_ref, atol=1e-4, rtol=1e-4), \
        "large-batch (multi-core split) mismatch vs reference"

    print("KERNEL_OK")
</pallas_src>

<mosaic_0001>
module attributes {stable_mosaic.version = 11 : i64} {
  func.func @_mlp_kernel(%arg0: i32, %arg1: memref<8x16xf32, #tpu.memory_space<vmem>>, %arg2: memref<32x16xf32, #tpu.memory_space<vmem>>, %arg3: memref<32x1xf32, #tpu.memory_space<vmem>>, %arg4: memref<16x32xf32, #tpu.memory_space<vmem>>, %arg5: memref<16x1xf32, #tpu.memory_space<vmem>>, %arg6: memref<8x16xf32, #tpu.memory_space<vmem>>, %arg7: memref<8x1xf32, #tpu.memory_space<vmem>>, %arg8: memref<8x1xf32, #tpu.memory_space<vmem>>, %arg9: memref<1x1xf32, #tpu.memory_space<vmem>>, %arg10: memref<1x8xf32, #tpu.memory_space<vmem>>) attributes {dimension_semantics = [#tpu.dimension_semantics<parallel>], iteration_bounds = array<i64: 1>, scalar_prefetch = 0 : i64, scratch_operands = 0 : i64, tpu.core_type = #tpu.core_type<tc>, window_params = [{transform_indices = @transform_0, window_bounds = array<i64: 8, 16>}, {pipeline_mode = #tpu.pipeline_mode<synchronous>, transform_indices = @transform_1, window_bounds = array<i64: 32, 16>}, {pipeline_mode = #tpu.pipeline_mode<synchronous>, transform_indices = @transform_2, window_bounds = array<i64: 32, 1>}, {pipeline_mode = #tpu.pipeline_mode<synchronous>, transform_indices = @transform_3, window_bounds = array<i64: 16, 32>}, {pipeline_mode = #tpu.pipeline_mode<synchronous>, transform_indices = @transform_4, window_bounds = array<i64: 16, 1>}, {pipeline_mode = #tpu.pipeline_mode<synchronous>, transform_indices = @transform_5, window_bounds = array<i64: 8, 16>}, {pipeline_mode = #tpu.pipeline_mode<synchronous>, transform_indices = @transform_6, window_bounds = array<i64: 8, 1>}, {pipeline_mode = #tpu.pipeline_mode<synchronous>, transform_indices = @transform_7, window_bounds = array<i64: 8, 1>}, {pipeline_mode = #tpu.pipeline_mode<synchronous>, transform_indices = @transform_8, window_bounds = array<i64: 1, 1>}, {transform_indices = @transform_9, window_bounds = array<i64: 1, 8>}]} {
    %c0 = arith.constant 0 : index
    %c0_0 = arith.constant 0 : index
    %0 = vector.load %arg1[%c0, %c0_0] : memref<8x16xf32, #tpu.memory_space<vmem>>, vector<8x16xf32>
    %c0_1 = arith.constant 0 : index
    %c0_2 = arith.constant 0 : index
    %1 = vector.load %arg2[%c0_1, %c0_2] : memref<32x16xf32, #tpu.memory_space<vmem>>, vector<32x16xf32>
    %cst = arith.constant dense<0.000000e+00> : vector<32x8xf32>
    %2 = tpu.matmul %1, %0, %cst {dimension_numbers = #tpu.dot_dimension_numbers<[1], [1], [0], [0], [0, 0, 1, 0], [], []>} : vector<32x16xf32>, vector<8x16xf32>, vector<32x8xf32> -> vector<32x8xf32>
    %c0_3 = arith.constant 0 : index
    %c0_4 = arith.constant 0 : index
    %3 = vector.load %arg3[%c0_3, %c0_4] : memref<32x1xf32, #tpu.memory_space<vmem>>, vector<32x1xf32>
    %4 = vector.broadcast %3 : vector<32x1xf32> to vector<32x8xf32>
    %5 = arith.addf %2, %4 : vector<32x8xf32>
    %cst_5 = arith.constant 0.000000e+00 : f32
    %6 = vector.broadcast %cst_5 : f32 to vector<32x8xf32>
    %7 = arith.maximumf %5, %6 : vector<32x8xf32>
    %c0_6 = arith.constant 0 : index
    %c0_7 = arith.constant 0 : index
    %8 = vector.load %arg4[%c0_6, %c0_7] : memref<16x32xf32, #tpu.memory_space<vmem>>, vector<16x32xf32>
    %cst_8 = arith.constant dense<0.000000e+00> : vector<16x8xf32>
    %9 = tpu.matmul %8, %7, %cst_8 {dimension_numbers = #tpu.dot_dimension_numbers<[1], [0], [0], [1], [0, 0, 1, 1], [], []>} : vector<16x32xf32>, vector<32x8xf32>, vector<16x8xf32> -> vector<16x8xf32>
    %c0_9 = arith.constant 0 : index
    %c0_10 = arith.constant 0 : index
    %10 = vector.load %arg5[%c0_9, %c0_10] : memref<16x1xf32, #tpu.memory_space<vmem>>, vector<16x1xf32>
    %11 = vector.broadcast %10 : vector<16x1xf32> to vector<16x8xf32>
    %12 = arith.addf %9, %11 : vector<16x8xf32>
    %cst_11 = arith.constant 0.000000e+00 : f32
    %13 = vector.broadcast %cst_11 : f32 to vector<16x8xf32>
    %14 = arith.maximumf %12, %13 : vector<16x8xf32>
    %c0_12 = arith.constant 0 : index
    %c0_13 = arith.constant 0 : index
    %15 = vector.load %arg6[%c0_12, %c0_13] : memref<8x16xf32, #tpu.memory_space<vmem>>, vector<8x16xf32>
    %cst_14 = arith.constant dense<0.000000e+00> : vector<8x8xf32>
    %16 = tpu.matmul %15, %14, %cst_14 {dimension_numbers = #tpu.dot_dimension_numbers<[1], [0], [0], [1], [0, 0, 1, 1], [], []>} : vector<8x16xf32>, vector<16x8xf32>, vector<8x8xf32> -> vector<8x8xf32>
    %c0_15 = arith.constant 0 : index
    %c0_16 = arith.constant 0 : index
    %17 = vector.load %arg7[%c0_15, %c0_16] : memref<8x1xf32, #tpu.memory_space<vmem>>, vector<8x1xf32>
    %18 = vector.broadcast %17 : vector<8x1xf32> to vector<8x8xf32>
    %19 = arith.addf %16, %18 : vector<8x8xf32>
    %cst_17 = arith.constant 0.000000e+00 : f32
    %20 = vector.broadcast %cst_17 : f32 to vector<8x8xf32>
    %21 = arith.maximumf %19, %20 : vector<8x8xf32>
    %c0_18 = arith.constant 0 : index
    %c0_19 = arith.constant 0 : index
    %22 = vector.load %arg8[%c0_18, %c0_19] : memref<8x1xf32, #tpu.memory_space<vmem>>, vector<8x1xf32>
    %23 = vector.broadcast %22 : vector<8x1xf32> to vector<8x8xf32>
    %24 = arith.mulf %23, %21 : vector<8x8xf32>
    %cst_20 = arith.constant dense<0.000000e+00> : vector<8xf32>
    %25 = vector.multi_reduction <add>, %24, %cst_20 [0] : vector<8x8xf32> to vector<8xf32>
    %26 = vector.shape_cast %25 : vector<8xf32> to vector<1x8xf32>
    %c0_21 = arith.constant 0 : index
    %c0_22 = arith.constant 0 : index
    %27 = vector.load %arg9[%c0_21, %c0_22] : memref<1x1xf32, #tpu.memory_space<vmem>>, vector<1x1xf32>
    %28 = vector.broadcast %27 : vector<1x1xf32> to vector<1x8xf32>
    %29 = arith.addf %26, %28 : vector<1x8xf32>
    %cst_23 = arith.constant 0.000000e+00 : f32
    %30 = vector.broadcast %cst_23 : f32 to vector<1x8xf32>
    %31 = arith.maximumf %29, %30 : vector<1x8xf32>
    %c0_24 = arith.constant 0 : index
    %c0_25 = arith.constant 0 : index
    %32 = vector.load %arg10[%c0_24, %c0_25] : memref<1x8xf32, #tpu.memory_space<vmem>>, vector<1x8xf32>
    tpu.vector_store %arg10[%c0_24, %c0_25], %31 {strides = array<i32>} : memref<1x8xf32, #tpu.memory_space<vmem>>, vector<1x8xf32>,
    return
  }
  func.func @transform_0(%arg0: i32) -> (i32, i32) {
    %c0_i32 = arith.constant 0 : i32
    %c0_i32_0 = arith.constant 0 : i32
    return %arg0, %c0_i32 : i32, i32
  }
  func.func @transform_1(%arg0: i32) -> (i32, i32) {
    %c0_i32 = arith.constant 0 : i32
    %c0_i32_0 = arith.constant 0 : i32
    %c0_i32_1 = arith.constant 0 : i32
    return %c0_i32, %c0_i32_0 : i32, i32
  }
  func.func @transform_2(%arg0: i32) -> (i32, i32) {
    %c0_i32 = arith.constant 0 : i32
    %c0_i32_0 = arith.constant 0 : i32
    %c0_i32_1 = arith.constant 0 : i32
    return %c0_i32, %c0_i32_0 : i32, i32
  }
  func.func @transform_3(%arg0: i32) -> (i32, i32) {
    %c0_i32 = arith.constant 0 : i32
    %c0_i32_0 = arith.constant 0 : i32
    %c0_i32_1 = arith.constant 0 : i32
    return %c0_i32, %c0_i32_0 : i32, i32
  }
  func.func @transform_4(%arg0: i32) -> (i32, i32) {
    %c0_i32 = arith.constant 0 : i32
    %c0_i32_0 = arith.constant 0 : i32
    %c0_i32_1 = arith.constant 0 : i32
    return %c0_i32, %c0_i32_0 : i32, i32
  }
  func.func @transform_5(%arg0: i32) -> (i32, i32) {
    %c0_i32 = arith.constant 0 : i32
    %c0_i32_0 = arith.constant 0 : i32
    %c0_i32_1 = arith.constant 0 : i32
    return %c0_i32, %c0_i32_0 : i32, i32
  }
  func.func @transform_6(%arg0: i32) -> (i32, i32) {
    %c0_i32 = arith.constant 0 : i32
    %c0_i32_0 = arith.constant 0 : i32
    %c0_i32_1 = arith.constant 0 : i32
    return %c0_i32, %c0_i32_0 : i32, i32
  }
  func.func @transform_7(%arg0: i32) -> (i32, i32) {
    %c0_i32 = arith.constant 0 : i32
    %c0_i32_0 = arith.constant 0 : i32
    %c0_i32_1 = arith.constant 0 : i32
    return %c0_i32, %c0_i32_0 : i32, i32
  }
  func.func @transform_8(%arg0: i32) -> (i32, i32) {
    %c0_i32 = arith.constant 0 : i32
    %c0_i32_0 = arith.constant 0 : i32
    %c0_i32_1 = arith.constant 0 : i32
    return %c0_i32, %c0_i32_0 : i32, i32
  }
  func.func @transform_9(%arg0: i32) -> (i32, i32) {
    %c0_i32 = arith.constant 0 : i32
    %c0_i32_0 = arith.constant 0 : i32
    return %c0_i32, %arg0 : i32, i32
  }
}

</mosaic_0001>

<llo_original>
// kernel: tpu_custom_call.1
$region0: #{tpu_custom_call.1}
  #allocation0 [shape = 'u32[]', space=smem, size = 0x4, offset = 0x4, fixed_abs, tag = 'smem constant byte address 0x4 - core index']
  #allocation1 [shape = 'u32[144,128]{1,0:T(1,128)}', space=vmem, size = 0x12000, scoped, tag = 'internal scratch']
  #allocation2 [shape = 'f32[1,1]{1,0:T(1,128)S(1)}', space=vmem, size = 0x200, scoped, tag = 'scoped memory for tpu_custom_call.1']
  %s0 = inlined_call_operand.vmem [shape: f32[8,16], index: 0, kind: input, shape index: {}]
  %s1 = inlined_call_operand.vmem [shape: f32[32,16], index: 1, kind: input, shape index: {}]
  %s2 = inlined_call_operand.vmem [shape: f32[32,1], index: 2, kind: input, shape index: {}]
  %s3 = inlined_call_operand.vmem [shape: f32[16,32], index: 3, kind: input, shape index: {}]
  %s4 = inlined_call_operand.vmem [shape: f32[16,1], index: 4, kind: input, shape index: {}]
  %s5 = inlined_call_operand.vmem [shape: f32[8,16], index: 5, kind: input, shape index: {}]
  %s6 = inlined_call_operand.vmem [shape: f32[8,1], index: 6, kind: input, shape index: {}]
  %s7 = inlined_call_operand.vmem [shape: f32[8,1], index: 7, kind: input, shape index: {}]
  %s8 = inlined_call_operand.<no memory space> [shape: f32[1,1], index: 8, kind: input, shape index: {}]
  %s9 = inlined_call_operand.hbm [shape: f32[1,8], index: 9, kind: output, shape index: {}]
  %s10 = sld [smem:[#allocation0]]
  $region46: #{tpu_custom_call.1} parent=0
    _
  %s12 = ssub.s32 1, %s10
  %s13 = scalar_select 0, %s12, %s10
  %v14 = vstv %s8
  %15 = vst [vmem:[#allocation2] sm:$0x1] %v14
  $region1: #{tpu_custom_call.1} parent=0
    #allocation3 [shape = 'u8[512]{0}', space=vmem, size = 0x400, scoped, tag = 'output window, operand 0, single buffered']
    #allocation4 [shape = 's32[1]{0}', space=sflag, size = 0x4, scoped, tag = 'scoped memory for tpu_custom_call.1']
    %16 = vsyncpa [#allocation4], 0
    // Predicated region
    $region2: #{tpu_custom_call.1} parent=1 // pred_check
      _
    $region3: #{tpu_custom_call.1} parent=1 // pred_check_branch
      %18 = sbr.rel (0) target = $region5
    $region4: #{tpu_custom_call.1} parent=1 // pred_region
      _
    $region5: #{tpu_custom_call.1} parent=1 // pred_fallthru
      _
    // Predicated region
    $region6: #{tpu_custom_call.1} parent=1 // pred_check
      _
    $region7: #{tpu_custom_call.1} parent=1 // pred_check_branch
      %20 = sbr.rel (0) target = $region9
    $region8: #{tpu_custom_call.1} parent=1 // pred_region
      _
    $region9: #{tpu_custom_call.1} parent=1 // pred_fallthru
      _
    // Predicated region
    $region10: #{tpu_custom_call.1} parent=1 // pred_check
      _
    $region11: #{tpu_custom_call.1} parent=1 // pred_check_branch
      %22 = sbr.rel (0) target = $region13
    $region12: #{tpu_custom_call.1} parent=1 // pred_region
      _
    $region13: #{tpu_custom_call.1} parent=1 // pred_fallthru
      _
    // Predicated region
    $region14: #{tpu_custom_call.1} parent=1 // pred_check
      _
    $region15: #{tpu_custom_call.1} parent=1 // pred_check_branch
      %24 = sbr.rel (0) target = $region17
    $region16: #{tpu_custom_call.1} parent=1 // pred_region
      _
    $region17: #{tpu_custom_call.1} parent=1 // pred_fallthru
      _
    // Predicated region
    $region18: #{tpu_custom_call.1} parent=1 // pred_check
      _
    $region19: #{tpu_custom_call.1} parent=1 // pred_check_branch
      %26 = sbr.rel (0) target = $region21
    $region20: #{tpu_custom_call.1} parent=1 // pred_region
      _
    $region21: #{tpu_custom_call.1} parent=1 // pred_fallthru
      _
    // Predicated region
    $region22: #{tpu_custom_call.1} parent=1 // pred_check
      _
    $region23: #{tpu_custom_call.1} parent=1 // pred_check_branch
      %28 = sbr.rel (0) target = $region25
    $region24: #{tpu_custom_call.1} parent=1 // pred_region
      _
    $region25: #{tpu_custom_call.1} parent=1 // pred_fallthru
      _
    // Predicated region
    $region26: #{tpu_custom_call.1} parent=1 // pred_check
      _
    $region27: #{tpu_custom_call.1} parent=1 // pred_check_branch
      %30 = sbr.rel (0) target = $region29
    $region28: #{tpu_custom_call.1} parent=1 // pred_region
      _
    $region29: #{tpu_custom_call.1} parent=1 // pred_fallthru
      _
    // Predicated region
    $region30: #{tpu_custom_call.1} parent=1 // pred_check
      _
    $region31: #{tpu_custom_call.1} parent=1 // pred_check_branch
      %32 = sbr.rel (0) target = $region33
    $region32: #{tpu_custom_call.1} parent=1 // pred_region
      _
    $region33: #{tpu_custom_call.1} parent=1 // pred_fallthru
      _
    // Predicated region
    $region34: #{tpu_custom_call.1} parent=1 // pred_check
      _
    $region35: #{tpu_custom_call.1} parent=1 // pred_check_branch
      %34 = sbr.rel (0) target = $region37
    $region36: #{tpu_custom_call.1} parent=1 // pred_region
      _
    $region37: #{tpu_custom_call.1} parent=1 // pred_fallthru
      _
    %v35 = vld [vmem:[%s0] sm:$0xff]
    %v36 = vld [vmem:[%s1] sm:$0xff]
    %v37 = vld [vmem:[%s1 + $0x8] sm:$0xff]
    %v38 = vld [vmem:[%s1 + $0x10] sm:$0xff]
    %v39 = vld [vmem:[%s1 + $0x18] sm:$0xff]
    %v40 = vld [vmem:[%s2] sm:$0xff]
    %v41 = vld [vmem:[%s2 + $0x8] sm:$0xff]
    %v42 = vld [vmem:[%s2 + $0x10] sm:$0xff]
    %v43 = vld [vmem:[%s2 + $0x18] sm:$0xff]
    %45 = vset.pattern.permute.xlu0 0
    %46 = vperm.xlu0 %45, %v40
    %v47 = vpop.permute.xlu0 %46
    %50 = vset.pattern.permute.xlu0 0
    %51 = vperm.xlu0 %50, %v41
    %v52 = vpop.permute.xlu0 %51
    %55 = vset.pattern.permute.xlu0 0
    %56 = vperm.xlu0 %55, %v42
    %v57 = vpop.permute.xlu0 %56
    %60 = vset.pattern.permute.xlu0 0
    %61 = vperm.xlu0 %60, %v43
    %v62 = vpop.permute.xlu0 %61
    %vm64 = vcmask 130048
    %v66 = vsel %vm64, %v36, 0
    %v69 = vsel %vm64, %v37, 0
    %v72 = vsel %vm64, %v38, 0
    %v75 = vsel %vm64, %v39, 0
    %v78 = vsel %vm64, %v35, 0
    %80 = vmatprep.subr.mxu0 0.0
    %81 = vmatpush1.xpose.msra.mxu0 0.0
    %82 = vmatprep.subr.mxu0 0.0
    %83 = vmatpush1.xpose.msra.mxu0 0.0
    %84 = vmatprep.subr.mxu0 0.0
    %85 = vmatpush1.xpose.msra.mxu0 0.0
    %86 = vmatprep.subr.mxu0 0.0
    %87 = vmatpush1.xpose.msra.mxu0 0.0
    %88 = vmatprep.subr.mxu0 0.0
    %89 = vmatpush1.xpose.msra.mxu0 0.0
    %90 = vmatprep.subr.mxu0 0.0
    %91 = vmatpush1.xpose.msra.mxu0 0.0
    %92 = vmatprep.subr.mxu0 0.0
    %93 = vmatpush1.xpose.msra.mxu0 0.0
    %94 = vmatprep.subr.mxu0 0.0
    %95 = vmatpush1.xpose.msra.mxu0 0.0
    %96 = vmatprep.subr.mxu0 0.0
    %97 = vmatpush1.xpose.msra.mxu0 0.0
    %98 = vmatprep.subr.mxu0 0.0
    %99 = vmatpush1.xpose.msra.mxu0 0.0
    %100 = vmatprep.subr.mxu0 0.0
    %101 = vmatpush1.xpose.msra.mxu0 0.0
    %102 = vmatprep.subr.mxu0 0.0
    %103 = vmatpush1.xpose.msra.mxu0 0.0
    %104 = vmatprep.subr.mxu0 0.0
    %105 = vmatpush1.xpose.msra.mxu0 0.0
    %106 = vmatprep.subr.mxu0 0.0
    %107 = vmatpush1.xpose.msra.mxu0 0.0
    %108 = vmatprep.subr.mxu0 0.0
    %109 = vmatpush1.xpose.msra.mxu0 0.0
    %110 = vmatprep.subr.mxu0 0.0
    %111 = vmatpush1.xpose.msra.mxu0 %v78
    %112 = vmatprep.subr.mxu0 0.0
    %113 = vmatpush2.xpose.msra.mxu0 0.0
    %114 = vmatprep.subr.mxu0 0.0
    %115 = vmatpush2.xpose.msra.mxu0 0.0
    %116 = vmatprep.subr.mxu0 0.0
    %117 = vmatpush2.xpose.msra.mxu0 0.0
    %118 = vmatprep.subr.mxu0 0.0
    %119 = vmatpush2.xpose.msra.mxu0 0.0
    %120 = vmatprep.subr.mxu0 0.0
    %121 = vmatpush2.xpose.msra.mxu0 0.0
    %122 = vmatprep.subr.mxu0 0.0
    %123 = vmatpush2.xpose.msra.mxu0 0.0
    %124 = vmatprep.subr.mxu0 0.0
    %125 = vmatpush2.xpose.msra.mxu0 0.0
    %126 = vmatprep.subr.mxu0 0.0
    %127 = vmatpush2.xpose.msra.mxu0 0.0
    %128 = vmatprep.subr.mxu0 0.0
    %129 = vmatpush2.xpose.msra.mxu0 0.0
    %130 = vmatprep.subr.mxu0 0.0
    %131 = vmatpush2.xpose.msra.mxu0 0.0
    %132 = vmatprep.subr.mxu0 0.0
    %133 = vmatpush2.xpose.msra.mxu0 0.0
    %134 = vmatprep.subr.mxu0 0.0
    %135 = vmatpush2.xpose.msra.mxu0 0.0
    %136 = vmatprep.subr.mxu0 0.0
    %137 = vmatpush2.xpose.msra.mxu0 0.0
    %138 = vmatprep.subr.mxu0 0.0
    %139 = vmatpush2.xpose.msra.mxu0 0.0
    %140 = vmatprep.subr.mxu0 0.0
    %141 = vmatpush2.xpose.msra.mxu0 0.0
    %142 = vmatprep.subr.mxu0 0.0
    %143 = vmatpush2.xpose.msra.mxu0 0.0
    %144 = vmatprep.mubr.f32.mxu0 0.0
    %145 = vmatmul.mubr.f32.gmra.mxu0 %v66
    %v146 = vpop.f32.mrf.mxu0
    %v147 = vadd.f32 %v47, %v146
    %v148 = vpop.f32.mrf.mxu0
    %149 = vmatprep.mubr.f32.mxu0 0.0
    %150 = vmatmul.mubr.f32.gmra.mxu0 %v69
    %v151 = vpop.f32.mrf.mxu0
    %v152 = vadd.f32 %v52, %v151
    %v153 = vpop.f32.mrf.mxu0
    %154 = vmatprep.mubr.f32.mxu0 0.0
    %155 = vmatmul.mubr.f32.gmra.mxu0 %v72
    %v156 = vpop.f32.mrf.mxu0
    %v157 = vadd.f32 %v57, %v156
    %v158 = vpop.f32.mrf.mxu0
    %159 = vmatprep.mubr.f32.mxu0 0.0
    %160 = vmatmul.mubr.f32.gmra.mxu0 %v75
    %v161 = vpop.f32.mrf.mxu0
    %v162 = vadd.f32 %v62, %v161
    %v163 = vpop.f32.mrf.mxu0
    %164 = vdwg.mxu0
    %v165 = vmax.f32 %v147, 0.0
    %v166 = vmax.f32 %v152, 0.0
    %v167 = vmax.f32 %v157, 0.0
    %v168 = vmax.f32 %v162, 0.0
    %v169 = vld [vmem:[%s3] sm:$0xff]
    %v170 = vld [vmem:[%s3 + $0x8] sm:$0xff]
    %v171 = vld [vmem:[%s4] sm:$0xff]
    %v172 = vld [vmem:[%s4 + $0x8] sm:$0xff]
    %174 = vset.pattern.permute.xlu0 0
    %175 = vperm.xlu0 %174, %v171
    %v176 = vpop.permute.xlu0 %175
    %179 = vset.pattern.permute.xlu0 0
    %180 = vperm.xlu0 %179, %v172
    %v181 = vpop.permute.xlu0 %180
    %vm183 = vcmask 261120
    %v185 = vsel %vm183, %v169, 0
    %v188 = vsel %vm183, %v170, 0
    %190 = vmatprep.subr.mxu0 0.0
    %191 = vmatpush1.msra.mxu0 0.0
    %192 = vmatprep.subr.mxu0 0.0
    %193 = vmatpush1.msra.mxu0 0.0
    %194 = vmatprep.subr.mxu0 0.0
    %195 = vmatpush1.msra.mxu0 0.0
    %196 = vmatprep.subr.mxu0 0.0
    %197 = vmatpush1.msra.mxu0 0.0
    %198 = vmatprep.subr.mxu0 0.0
    %199 = vmatpush1.msra.mxu0 0.0
    %200 = vmatprep.subr.mxu0 0.0
    %201 = vmatpush1.msra.mxu0 0.0
    %202 = vmatprep.subr.mxu0 0.0
    %203 = vmatpush1.msra.mxu0 0.0
    %204 = vmatprep.subr.mxu0 0.0
    %205 = vmatpush1.msra.mxu0 0.0
    %206 = vmatprep.subr.mxu0 0.0
    %207 = vmatpush1.msra.mxu0 0.0
    %208 = vmatprep.subr.mxu0 0.0
    %209 = vmatpush1.msra.mxu0 0.0
    %210 = vmatprep.subr.mxu0 0.0
    %211 = vmatpush1.msra.mxu0 0.0
    %212 = vmatprep.subr.mxu0 0.0
    %213 = vmatpush1.msra.mxu0 0.0
    %214 = vmatprep.subr.mxu0 0.0
    %215 = vmatpush1.msra.mxu0 %v168
    %216 = vmatprep.subr.mxu0 0.0
    %217 = vmatpush1.msra.mxu0 %v167
    %218 = vmatprep.subr.mxu0 0.0
    %219 = vmatpush1.msra.mxu0 %v166
    %220 = vmatprep.subr.mxu0 0.0
    %221 = vmatpush1.msra.mxu0 %v165
    %222 = vmatprep.subr.mxu0 0.0
    %223 = vmatpush2.msra.mxu0 0.0
    %224 = vmatprep.subr.mxu0 0.0
    %225 = vmatpush2.msra.mxu0 0.0
    %226 = vmatprep.subr.mxu0 0.0
    %227 = vmatpush2.msra.mxu0 0.0
    %228 = vmatprep.subr.mxu0 0.0
    %229 = vmatpush2.msra.mxu0 0.0
    %230 = vmatprep.subr.mxu0 0.0
    %231 = vmatpush2.msra.mxu0 0.0
    %232 = vmatprep.subr.mxu0 0.0
    %233 = vmatpush2.msra.mxu0 0.0
    %234 = vmatprep.subr.mxu0 0.0
    %235 = vmatpush2.msra.mxu0 0.0
    %236 = vmatprep.subr.mxu0 0.0
    %237 = vmatpush2.msra.mxu0 0.0
    %238 = vmatprep.subr.mxu0 0.0
    %239 = vmatpush2.msra.mxu0 0.0
    %240 = vmatprep.subr.mxu0 0.0
    %241 = vmatpush2.msra.mxu0 0.0
    %242 = vmatprep.subr.mxu0 0.0
    %243 = vmatpush2.msra.mxu0 0.0
    %244 = vmatprep.subr.mxu0 0.0
    %245 = vmatpush2.msra.mxu0 0.0
    %246 = vmatprep.subr.mxu0 0.0
    %247 = vmatpush2.msra.mxu0 0.0
    %248 = vmatprep.subr.mxu0 0.0
    %249 = vmatpush2.msra.mxu0 0.0
    %250 = vmatprep.subr.mxu0 0.0
    %251 = vmatpush2.msra.mxu0 0.0
    %252 = vmatprep.subr.mxu0 0.0
    %253 = vmatpush2.msra.mxu0 0.0
    %254 = vmatprep.mubr.f32.mxu0 0.0
    %255 = vmatmul.mubr.f32.gmra.mxu0 %v185
    %v256 = vpop.f32.mrf.mxu0
    %v257 = vadd.f32 %v176, %v256
    %v258 = vpop.f32.mrf.mxu0
    %259 = vmatprep.mubr.f32.mxu0 0.0
    %260 = vmatmul.mubr.f32.gmra.mxu0 %v188
    %v261 = vpop.f32.mrf.mxu0
    %v262 = vadd.f32 %v181, %v261
    %v263 = vpop.f32.mrf.mxu0
    %264 = vdwg.mxu0
    %v265 = vmax.f32 %v257, 0.0
    %v266 = vmax.f32 %v262, 0.0
    %v267 = vld [vmem:[%s5] sm:$0xff]
    %v268 = vld [vmem:[%s6] sm:$0xff]
    %270 = vset.pattern.permute.xlu0 0
    %271 = vperm.xlu0 %270, %v268
    %v272 = vpop.permute.xlu0 %271
    %v275 = vsel %vm64, %v267, 0
    %277 = vmatprep.subr.mxu0 0.0
    %278 = vmatpush1.msra.mxu0 0.0
    %279 = vmatprep.subr.mxu0 0.0
    %280 = vmatpush1.msra.mxu0 0.0
    %281 = vmatprep.subr.mxu0 0.0
    %282 = vmatpush1.msra.mxu0 0.0
    %283 = vmatprep.subr.mxu0 0.0
    %284 = vmatpush1.msra.mxu0 0.0
    %285 = vmatprep.subr.mxu0 0.0
    %286 = vmatpush1.msra.mxu0 0.0
    %287 = vmatprep.subr.mxu0 0.0
    %288 = vmatpush1.msra.mxu0 0.0
    %289 = vmatprep.subr.mxu0 0.0
    %290 = vmatpush1.msra.mxu0 0.0
    %291 = vmatprep.subr.mxu0 0.0
    %292 = vmatpush1.msra.mxu0 0.0
    %293 = vmatprep.subr.mxu0 0.0
    %294 = vmatpush1.msra.mxu0 0.0
    %295 = vmatprep.subr.mxu0 0.0
    %296 = vmatpush1.msra.mxu0 0.0
    %297 = vmatprep.subr.mxu0 0.0
    %298 = vmatpush1.msra.mxu0 0.0
    %299 = vmatprep.subr.mxu0 0.0
    %300 = vmatpush1.msra.mxu0 0.0
    %301 = vmatprep.subr.mxu0 0.0
    %302 = vmatpush1.msra.mxu0 0.0
    %303 = vmatprep.subr.mxu0 0.0
    %304 = vmatpush1.msra.mxu0 0.0
    %305 = vmatprep.subr.mxu0 0.0
    %306 = vmatpush1.msra.mxu0 %v266
    %307 = vmatprep.subr.mxu0 0.0
    %308 = vmatpush1.msra.mxu0 %v265
    %309 = vmatprep.subr.mxu0 0.0
    %310 = vmatpush2.msra.mxu0 0.0
    %311 = vmatprep.subr.mxu0 0.0
    %312 = vmatpush2.msra.mxu0 0.0
    %313 = vmatprep.subr.mxu0 0.0
    %314 = vmatpush2.msra.mxu0 0.0
    %315 = vmatprep.subr.mxu0 0.0
    %316 = vmatpush2.msra.mxu0 0.0
    %317 = vmatprep.subr.mxu0 0.0
    %318 = vmatpush2.msra.mxu0 0.0
    %319 = vmatprep.subr.mxu0 0.0
    %320 = vmatpush2.msra.mxu0 0.0
    %321 = vmatprep.subr.mxu0 0.0
    %322 = vmatpush2.msra.mxu0 0.0
    %323 = vmatprep.subr.mxu0 0.0
    %324 = vmatpush2.msra.mxu0 0.0
    %325 = vmatprep.subr.mxu0 0.0
    %326 = vmatpush2.msra.mxu0 0.0
    %327 = vmatprep.subr.mxu0 0.0
    %328 = vmatpush2.msra.mxu0 0.0
    %329 = vmatprep.subr.mxu0 0.0
    %330 = vmatpush2.msra.mxu0 0.0
    %331 = vmatprep.subr.mxu0 0.0
    %332 = vmatpush2.msra.mxu0 0.0
    %333 = vmatprep.subr.mxu0 0.0
    %334 = vmatpush2.msra.mxu0 0.0
    %335 = vmatprep.subr.mxu0 0.0
    %336 = vmatpush2.msra.mxu0 0.0
    %337 = vmatprep.subr.mxu0 0.0
    %338 = vmatpush2.msra.mxu0 0.0
    %339 = vmatprep.subr.mxu0 0.0
    %340 = vmatpush2.msra.mxu0 0.0
    %341 = vmatprep.mubr.f32.mxu0 0.0
    %342 = vmatmul.mubr.f32.gmra.mxu0 %v275
    %v343 = vpop.f32.mrf.mxu0
    %v344 = vadd.f32 %v272, %v343
    %v345 = vpop.f32.mrf.mxu0
    %346 = vdwg.mxu0
    %v347 = vmax.f32 %v344, 0.0
    %v348 = vld [vmem:[%s7] sm:$0xff]
    %350 = vset.pattern.permute.xlu0 0
    %351 = vperm.xlu0 %350, %v348
    %v352 = vpop.permute.xlu0 %351
    %v354 = vmul.f32 %v352, %v347
    %vm355 = vcmask 64512
    %v356 = vsel %vm355, %v354, 0.0
    %v357 = vrot.slane %v356, 4
    %v358 = vadd.f32 %v356, %v357
    %v359 = vrot.slane %v358, 2
    %v360 = vadd.f32 %v358, %v359
    %v361 = vrot.slane %v360, 1
    %v362 = vadd.f32 %v360, %v361
    %v363 = vld [vmem:[#allocation2] sm:$0x1]
    %365 = vset.pattern.permute.xlu0 0
    %366 = vperm.xlu0 %365, %v363
    %v367 = vpop.permute.xlu0 %366
    %v369 = vlaneseq
    %v370 = vshrl.u32 %v369, 7
    %v371 = vsub.s32 0, %v370
    %v372 = vrot.slane %v367, %v371
    %v373 = vadd.f32 %v362, %v372
    %v374 = vmax.f32 %v373, 0.0
    %vm375 = vcmask 57344
    %376 = vst.msk [vmem:[#allocation3] sm:$0x1] %vm375, %v374
    // Predicated region
    $region38: #{tpu_custom_call.1} parent=1 // pred_check
      _
    $region39: #{tpu_custom_call.1} parent=1 // pred_check_branch
      %378 = sbr.rel (0) target = $region41
    $region40: #{tpu_custom_call.1} parent=1 // pred_region
      %s380 = ssub.s32 16, 16
      %381 = vsyncadd [#allocation4], %s380
      %s383 = sshll.u32 [#allocation3], 4
      %s384 = int_to_ptr.vmem [resolvable:$true] %s383
      %386 = dma.vmem_to_hbm [thread:$0]  %s384, 16, %s9, [#allocation4]
    $region41: #{tpu_custom_call.1} parent=1 // pred_fallthru
      _
    // Predicated region
    $region42: #{tpu_custom_call.1} parent=1 // pred_check
      _
    $region43: #{tpu_custom_call.1} parent=1 // pred_check_branch
      %388 = sbr.rel (0) target = $region45
    $region44: #{tpu_custom_call.1} parent=1 // pred_region
      %389 = dma.done [#allocation4], 16
    $region45: #{tpu_custom_call.1} parent=1 // pred_fallthru
      _
    %390 = vsyncpa [#allocation4], 1

</llo_original>
